<compile_context>
chip_gen: v5e
topology: v5e:2x2
jax: 0.10.0
libtpu: 0.0.40
codegen_flags: <defaults>
</compile_context>

<pallas_src>
import functools

import jax
import jax.numpy as jnp
import numpy as np
from jax import lax
from jax.experimental import pallas as pl
from jax.experimental.pallas import tpu as pltpu

# ---- problem sizes (small, consistent with the matcher's transformer) ----
B, S = 2, 8                 # batch, sequence
D_MODEL = 32                # d_model
D_FF = 64                   # d_ff (hidden)
D_OUT = 32                  # d_out

# Contract on axis 1 of both operands: (M, K) x (N, K) -> (M, N), i.e. x @ W^T
# without materializing a transposed weight copy.
_DN_CONTRACT_AX1 = (((1,), (1,)), ((), ()))


# ----------------------------------------------------------------------------
# kernel: one row-block of the fused FFN forward
# ----------------------------------------------------------------------------
def ffn_kernel(x_ref, w1_ref, b1_ref, w2_ref, b2_ref, o_ref):
    # x_ref : (tm, d_model)   -- tokens on the sublane axis
    # w1_ref: (d_ff, d_model) -- torch nn.Linear layout, contracted on axis 1
    # w2_ref: (d_out, d_ff)
    x = x_ref[...]
    h = lax.dot_general(x, w1_ref[...], _DN_CONTRACT_AX1,
                        preferred_element_type=jnp.float32,
                        precision=lax.Precision.HIGHEST)
    h = jnp.maximum(h + b1_ref[...], 0.0)                      # bias + ReLU (VPU)
    y = lax.dot_general(h, w2_ref[...], _DN_CONTRACT_AX1,
                        preferred_element_type=jnp.float32,
                        precision=lax.Precision.HIGHEST)
    o_ref[...] = (y + b2_ref[...]).astype(o_ref.dtype)


# ----------------------------------------------------------------------------
# one-time parameter prep (parameter-load time, NOT the per-call hot path)
# ----------------------------------------------------------------------------
def prepare_ffn_params(w1, b1, w2, b2):
    """Torch layout in: w1 (d_ff, d_model), b1 (d_ff,), w2 (d_out, d_ff),
    b2 (d_out,).  Only the biases are reshaped to (1, D) rows; weights are
    kept as-is (the kernel contracts on their axis 1)."""
    return dict(w1=w1, b1=b1.reshape(1, -1), w2=w2, b2=b2.reshape(1, -1))


# ----------------------------------------------------------------------------
# jitted forward wrapper
# ----------------------------------------------------------------------------
@functools.partial(jax.jit, static_argnames=("block_m",))
def positionwise_ffn(x, params, block_m=256):
    """x: (B, S, d_model).  params from prepare_ffn_params."""
    b_, s_, d_model = x.shape
    m = b_ * s_
    w1, b1, w2, b2 = params["w1"], params["b1"], params["w2"], params["b2"]
    d_ff = w1.shape[0]
    d_out = w2.shape[0]

    x2d = x.reshape(m, d_model)              # fold batch onto the sublane axis

    # Row tiling: full-extent single block when M is small, else block_m rows
    # per grid step (block_m is a multiple of 8; trailing partial blocks are
    # masked by Pallas).
    tm = m if m <= block_m else block_m
    grid = (pl.cdiv(m, tm),)

    out2d = pl.pallas_call(
        ffn_kernel,
        out_shape=jax.ShapeDtypeStruct((m, d_out), x.dtype),
        grid_spec=pltpu.PrefetchScalarGridSpec(
            num_scalar_prefetch=0,
            grid=grid,
            in_specs=[
                pl.BlockSpec((tm, d_model), lambda i: (i, 0)),   # stream x rows
                pl.BlockSpec((d_ff, d_model), lambda i: (0, 0)),  # resident
                pl.BlockSpec((1, d_ff), lambda i: (0, 0)),        # resident
                pl.BlockSpec((d_out, d_ff), lambda i: (0, 0)),    # resident
                pl.BlockSpec((1, d_out), lambda i: (0, 0)),       # resident
            ],
            out_specs=pl.BlockSpec((tm, d_out), lambda i: (i, 0)),
        ),
        compiler_params=pltpu.CompilerParams(
            dimension_semantics=("parallel",)),   # v7x: split row blocks across TCs
    )(x2d, w1, b1, w2, b2)

    return out2d.reshape(b_, s_, d_out)


# ----------------------------------------------------------------------------
# pure-JAX reference (same math, no Pallas)
# ----------------------------------------------------------------------------
def ref_ffn(x, w1, b1, w2, b2):
    h = jnp.maximum(x @ w1.T + b1, 0.0)
    return h @ w2.T + b2


# ----------------------------------------------------------------------------
# driver
# ----------------------------------------------------------------------------
if __name__ == "__main__":
    root = jax.random.PRNGKey(0)
    kx, k1, k2, k3, k4 = jax.random.split(root, 5)

    x = jax.random.normal(kx, (B, S, D_MODEL), dtype=jnp.float32)
    w1 = (0.1 * jax.random.normal(k1, (D_FF, D_MODEL))).astype(jnp.float32)
    b1 = (0.01 * jax.random.normal(k2, (D_FF,))).astype(jnp.float32)
    w2 = (0.1 * jax.random.normal(k3, (D_OUT, D_FF))).astype(jnp.float32)
    b2 = (0.01 * jax.random.normal(k4, (D_OUT,))).astype(jnp.float32)

    params = prepare_ffn_params(w1, b1, w2, b2)   # one-time layout prep

    out = positionwise_ffn(x, params)
    out = jax.block_until_ready(out)

    ref = ref_ffn(x, w1, b1, w2, b2)
    np.testing.assert_allclose(np.asarray(out), np.asarray(ref),
                               rtol=1e-5, atol=1e-5)
    print("KERNEL_OK")
</pallas_src>

<mosaic_0001>
module attributes {stable_mosaic.version = 11 : i64} {
  func.func @ffn_kernel(%arg0: i32, %arg1: memref<16x32xf32, #tpu.memory_space<vmem>>, %arg2: memref<64x32xf32, #tpu.memory_space<vmem>>, %arg3: memref<1x64xf32, #tpu.memory_space<vmem>>, %arg4: memref<32x64xf32, #tpu.memory_space<vmem>>, %arg5: memref<1x32xf32, #tpu.memory_space<vmem>>, %arg6: memref<16x32xf32, #tpu.memory_space<vmem>>) attributes {dimension_semantics = [#tpu.dimension_semantics<parallel>], iteration_bounds = array<i64: 1>, scalar_prefetch = 0 : i64, scratch_operands = 0 : i64, tpu.core_type = #tpu.core_type<tc>, window_params = [{transform_indices = @transform_0, window_bounds = array<i64: 16, 32>}, {pipeline_mode = #tpu.pipeline_mode<synchronous>, transform_indices = @transform_1, window_bounds = array<i64: 64, 32>}, {pipeline_mode = #tpu.pipeline_mode<synchronous>, transform_indices = @transform_2, window_bounds = array<i64: 1, 64>}, {pipeline_mode = #tpu.pipeline_mode<synchronous>, transform_indices = @transform_3, window_bounds = array<i64: 32, 64>}, {pipeline_mode = #tpu.pipeline_mode<synchronous>, transform_indices = @transform_4, window_bounds = array<i64: 1, 32>}, {transform_indices = @transform_5, window_bounds = array<i64: 16, 32>}]} {
    %c0 = arith.constant 0 : index
    %c0_0 = arith.constant 0 : index
    %0 = vector.load %arg1[%c0, %c0_0] : memref<16x32xf32, #tpu.memory_space<vmem>>, vector<16x32xf32>
    %c0_1 = arith.constant 0 : index
    %c0_2 = arith.constant 0 : index
    %1 = vector.load %arg2[%c0_1, %c0_2] : memref<64x32xf32, #tpu.memory_space<vmem>>, vector<64x32xf32>
    %cst = arith.constant dense<0.000000e+00> : vector<16x64xf32>
    %2 = tpu.matmul %0, %1, %cst {dimension_numbers = #tpu.dot_dimension_numbers<[1], [1], [0], [0], [0, 0, 1, 0], [], []>, precision = #tpu.contract_precision<fp32>} : vector<16x32xf32>, vector<64x32xf32>, vector<16x64xf32> -> vector<16x64xf32>
    %c0_3 = arith.constant 0 : index
    %c0_4 = arith.constant 0 : index
    %3 = vector.load %arg3[%c0_3, %c0_4] : memref<1x64xf32, #tpu.memory_space<vmem>>, vector<1x64xf32>
    %4 = vector.broadcast %3 : vector<1x64xf32> to vector<16x64xf32>
    %5 = arith.addf %2, %4 : vector<16x64xf32>
    %cst_5 = arith.constant 0.000000e+00 : f32
    %6 = vector.broadcast %cst_5 : f32 to vector<16x64xf32>
    %7 = arith.maximumf %5, %6 : vector<16x64xf32>
    %c0_6 = arith.constant 0 : index
    %c0_7 = arith.constant 0 : index
    %8 = vector.load %arg4[%c0_6, %c0_7] : memref<32x64xf32, #tpu.memory_space<vmem>>, vector<32x64xf32>
    %cst_8 = arith.constant dense<0.000000e+00> : vector<16x32xf32>
    %9 = tpu.matmul %7, %8, %cst_8 {dimension_numbers = #tpu.dot_dimension_numbers<[1], [1], [0], [0], [0, 0, 1, 0], [], []>, precision = #tpu.contract_precision<fp32>} : vector<16x64xf32>, vector<32x64xf32>, vector<16x32xf32> -> vector<16x32xf32>
    %c0_9 = arith.constant 0 : index
    %c0_10 = arith.constant 0 : index
    %10 = vector.load %arg5[%c0_9, %c0_10] : memref<1x32xf32, #tpu.memory_space<vmem>>, vector<1x32xf32>
    %11 = vector.broadcast %10 : vector<1x32xf32> to vector<16x32xf32>
    %12 = arith.addf %9, %11 : vector<16x32xf32>
    %c0_11 = arith.constant 0 : index
    %c0_12 = arith.constant 0 : index
    %13 = vector.load %arg6[%c0_11, %c0_12] : memref<16x32xf32, #tpu.memory_space<vmem>>, vector<16x32xf32>
    tpu.vector_store %arg6[%c0_11, %c0_12], %12 {strides = array<i32>} : memref<16x32xf32, #tpu.memory_space<vmem>>, vector<16x32xf32>,
    return
  }
  func.func @transform_0(%arg0: i32) -> (i32, i32) {
    %c0_i32 = arith.constant 0 : i32
    %c0_i32_0 = arith.constant 0 : i32
    return %arg0, %c0_i32 : i32, i32
  }
  func.func @transform_1(%arg0: i32) -> (i32, i32) {
    %c0_i32 = arith.constant 0 : i32
    %c0_i32_0 = arith.constant 0 : i32
    %c0_i32_1 = arith.constant 0 : i32
    return %c0_i32, %c0_i32_0 : i32, i32
  }
  func.func @transform_2(%arg0: i32) -> (i32, i32) {
    %c0_i32 = arith.constant 0 : i32
    %c0_i32_0 = arith.constant 0 : i32
    %c0_i32_1 = arith.constant 0 : i32
    return %c0_i32, %c0_i32_0 : i32, i32
  }
  func.func @transform_3(%arg0: i32) -> (i32, i32) {
    %c0_i32 = arith.constant 0 : i32
    %c0_i32_0 = arith.constant 0 : i32
    %c0_i32_1 = arith.constant 0 : i32
    return %c0_i32, %c0_i32_0 : i32, i32
  }
  func.func @transform_4(%arg0: i32) -> (i32, i32) {
    %c0_i32 = arith.constant 0 : i32
    %c0_i32_0 = arith.constant 0 : i32
    %c0_i32_1 = arith.constant 0 : i32
    return %c0_i32, %c0_i32_0 : i32, i32
  }
  func.func @transform_5(%arg0: i32) -> (i32, i32) {
    %c0_i32 = arith.constant 0 : i32
    %c0_i32_0 = arith.constant 0 : i32
    return %arg0, %c0_i32 : i32, i32
  }
}

</mosaic_0001>

<llo_original>
// kernel: positionwise_ffn.1
$region0: #{positionwise_ffn.1}
  #allocation0 [shape = 'u32[]', space=smem, size = 0x4, offset = 0x4, fixed_abs, tag = 'smem constant byte address 0x4 - core index']
  #allocation1 [shape = 'u32[72,128]{1,0:T(1,128)}', space=vmem, size = 0x9000, scoped, tag = 'internal scratch']
  %s0 = inlined_call_operand.vmem [shape: f32[16,32], index: 0, kind: input, shape index: {}]
  %s1 = inlined_call_operand.vmem [shape: f32[64,32], index: 1, kind: input, shape index: {}]
  %s2 = inlined_call_operand.vmem [shape: f32[1,64], index: 2, kind: input, shape index: {}]
  %s3 = inlined_call_operand.vmem [shape: f32[32,64], index: 3, kind: input, shape index: {}]
  %s4 = inlined_call_operand.vmem [shape: f32[1,32], index: 4, kind: input, shape index: {}]
  %s5 = inlined_call_operand.hbm [shape: f32[16,32], index: 5, kind: output, shape index: {}]
  %s6 = sld [smem:[#allocation0]]
  $region30: #{positionwise_ffn.1} parent=0
    _
  %s8 = ssub.s32 1, %s6
  %s9 = scalar_select 0, %s8, %s6
  $region1: #{positionwise_ffn.1} parent=0
    #allocation2 [shape = 'u8[8192]{0}', space=vmem, size = 0x2000, scoped, tag = 'output window, operand 0, single buffered']
    #allocation3 [shape = 's32[1]{0}', space=sflag, size = 0x4, scoped, tag = 'scoped memory for positionwise_ffn.1']
    %10 = vsyncpa [#allocation3], 0
    // Predicated region
    $region2: #{positionwise_ffn.1} parent=1 // pred_check
      _
    $region3: #{positionwise_ffn.1} parent=1 // pred_check_branch
      %12 = sbr.rel (0) target = $region5
    $region4: #{positionwise_ffn.1} parent=1 // pred_region
      _
    $region5: #{positionwise_ffn.1} parent=1 // pred_fallthru
      _
    // Predicated region
    $region6: #{positionwise_ffn.1} parent=1 // pred_check
      _
    $region7: #{positionwise_ffn.1} parent=1 // pred_check_branch
      %14 = sbr.rel (0) target = $region9
    $region8: #{positionwise_ffn.1} parent=1 // pred_region
      _
    $region9: #{positionwise_ffn.1} parent=1 // pred_fallthru
      _
    // Predicated region
    $region10: #{positionwise_ffn.1} parent=1 // pred_check
      _
    $region11: #{positionwise_ffn.1} parent=1 // pred_check_branch
      %16 = sbr.rel (0) target = $region13
    $region12: #{positionwise_ffn.1} parent=1 // pred_region
      _
    $region13: #{positionwise_ffn.1} parent=1 // pred_fallthru
      _
    // Predicated region
    $region14: #{positionwise_ffn.1} parent=1 // pred_check
      _
    $region15: #{positionwise_ffn.1} parent=1 // pred_check_branch
      %18 = sbr.rel (0) target = $region17
    $region16: #{positionwise_ffn.1} parent=1 // pred_region
      _
    $region17: #{positionwise_ffn.1} parent=1 // pred_fallthru
      _
    // Predicated region
    $region18: #{positionwise_ffn.1} parent=1 // pred_check
      _
    $region19: #{positionwise_ffn.1} parent=1 // pred_check_branch
      %20 = sbr.rel (0) target = $region21
    $region20: #{positionwise_ffn.1} parent=1 // pred_region
      _
    $region21: #{positionwise_ffn.1} parent=1 // pred_fallthru
      _
    %v21 = vld [vmem:[%s0] sm:$0xff]
    %v22 = vld [vmem:[%s0 + $0x8] sm:$0xff]
    %v23 = vld [vmem:[%s1] sm:$0xff]
    %v24 = vld [vmem:[%s1 + $0x8] sm:$0xff]
    %v25 = vld [vmem:[%s1 + $0x10] sm:$0xff]
    %v26 = vld [vmem:[%s1 + $0x18] sm:$0xff]
    %v27 = vld [vmem:[%s1 + $0x20] sm:$0xff]
    %v28 = vld [vmem:[%s1 + $0x28] sm:$0xff]
    %v29 = vld [vmem:[%s1 + $0x30] sm:$0xff]
    %v30 = vld [vmem:[%s1 + $0x38] sm:$0xff]
    %v31 = vld [vmem:[%s2] sm:$0x1]
    %v33 = vperm.slane %v31, 0
    %vm35 = vcmask 261120
    %v37 = vsel %vm35, %v21, 0
    %v40 = vsel %vm35, %v22, 0
    %v43 = vsel %vm35, %v23, 0
    %v46 = vsel %vm35, %v24, 0
    %v49 = vsel %vm35, %v25, 0
    %v52 = vsel %vm35, %v26, 0
    %v55 = vsel %vm35, %v27, 0
    %v58 = vsel %vm35, %v28, 0
    %v61 = vsel %vm35, %v29, 0
    %v64 = vsel %vm35, %v30, 0
    %66 = vmatpush.xpose.msra.mxu0 0.0
    %67 = vmatpush.xpose.msra.mxu0 0.0
    %68 = vmatpush.xpose.msra.mxu0 0.0
    %69 = vmatpush.xpose.msra.mxu0 0.0
    %70 = vmatpush.xpose.msra.mxu0 0.0
    %71 = vmatpush.xpose.msra.mxu0 0.0
    %72 = vmatpush.xpose.msra.mxu0 0.0
    %73 = vmatpush.xpose.msra.mxu0 0.0
    %v74 = vand.u32 %v64, 4294901760
    %75 = vmatpush.xpose.msra.mxu0 %v74
    %v76 = vand.u32 %v61, 4294901760
    %77 = vmatpush.xpose.msra.mxu0 %v76
    %v78 = vand.u32 %v58, 4294901760
    %79 = vmatpush.xpose.msra.mxu0 %v78
    %v80 = vand.u32 %v55, 4294901760
    %81 = vmatpush.xpose.msra.mxu0 %v80
    %v82 = vand.u32 %v52, 4294901760
    %83 = vmatpush.xpose.msra.mxu0 %v82
    %v84 = vand.u32 %v49, 4294901760
    %85 = vmatpush.xpose.msra.mxu0 %v84
    %v86 = vand.u32 %v46, 4294901760
    %87 = vmatpush.xpose.msra.mxu0 %v86
    %v88 = vand.u32 %v43, 4294901760
    %89 = vmatpush.xpose.msra.mxu0 %v88
    %v90 = vand.u32 %v37, 4294901760
    %v91 = vsub.f32 %v37, %v90
    %v92 = vand.u32 %v91, 4294901760
    %v93 = vsub.f32 %v91, %v92
    %v94 = vand.u32 %v93, 4294901760
    %95 = vmatmul.f32.gmra.mxu0 %v94
    %v96 = vpop.f32.mrf.mxu0
    %v97 = vadd.f32 %v33, %v96
    %v98 = vand.u32 %v40, 4294901760
    %v99 = vsub.f32 %v40, %v98
    %v100 = vand.u32 %v99, 4294901760
    %v101 = vsub.f32 %v99, %v100
    %v102 = vand.u32 %v101, 4294901760
    %103 = vmatmul.f32.gmra.mxu0 %v102
    %v104 = vpop.f32.mrf.mxu0
    %v105 = vadd.f32 %v33, %v104
    %106 = vdwg.mxu0
    %107 = vmatpush.xpose.msra.mxu0 0.0
    %108 = vmatpush.xpose.msra.mxu0 0.0
    %109 = vmatpush.xpose.msra.mxu0 0.0
    %110 = vmatpush.xpose.msra.mxu0 0.0
    %111 = vmatpush.xpose.msra.mxu0 0.0
    %112 = vmatpush.xpose.msra.mxu0 0.0
    %113 = vmatpush.xpose.msra.mxu0 0.0
    %114 = vmatpush.xpose.msra.mxu0 0.0
    %v115 = vand.u32 %v64, 4294901760
    %v116 = vsub.f32 %v64, %v115
    %v117 = vand.u32 %v116, 4294901760
    %v118 = vsub.f32 %v116, %v117
    %v119 = vand.u32 %v118, 4294901760
    %120 = vmatpush.xpose.msra.mxu0 %v119
    %v121 = vand.u32 %v61, 4294901760
    %v122 = vsub.f32 %v61, %v121
    %v123 = vand.u32 %v122, 4294901760
    %v124 = vsub.f32 %v122, %v123
    %v125 = vand.u32 %v124, 4294901760
    %126 = vmatpush.xpose.msra.mxu0 %v125
    %v127 = vand.u32 %v58, 4294901760
    %v128 = vsub.f32 %v58, %v127
    %v129 = vand.u32 %v128, 4294901760
    %v130 = vsub.f32 %v128, %v129
    %v131 = vand.u32 %v130, 4294901760
    %132 = vmatpush.xpose.msra.mxu0 %v131
    %v133 = vand.u32 %v55, 4294901760
    %v134 = vsub.f32 %v55, %v133
    %v135 = vand.u32 %v134, 4294901760
    %v136 = vsub.f32 %v134, %v135
    %v137 = vand.u32 %v136, 4294901760
    %138 = vmatpush.xpose.msra.mxu0 %v137
    %v139 = vand.u32 %v52, 4294901760
    %v140 = vsub.f32 %v52, %v139
    %v141 = vand.u32 %v140, 4294901760
    %v142 = vsub.f32 %v140, %v141
    %v143 = vand.u32 %v142, 4294901760
    %144 = vmatpush.xpose.msra.mxu0 %v143
    %v145 = vand.u32 %v49, 4294901760
    %v146 = vsub.f32 %v49, %v145
    %v147 = vand.u32 %v146, 4294901760
    %v148 = vsub.f32 %v146, %v147
    %v149 = vand.u32 %v148, 4294901760
    %150 = vmatpush.xpose.msra.mxu0 %v149
    %v151 = vand.u32 %v46, 4294901760
    %v152 = vsub.f32 %v46, %v151
    %v153 = vand.u32 %v152, 4294901760
    %v154 = vsub.f32 %v152, %v153
    %v155 = vand.u32 %v154, 4294901760
    %156 = vmatpush.xpose.msra.mxu0 %v155
    %v157 = vand.u32 %v43, 4294901760
    %v158 = vsub.f32 %v43, %v157
    %v159 = vand.u32 %v158, 4294901760
    %v160 = vsub.f32 %v158, %v159
    %v161 = vand.u32 %v160, 4294901760
    %162 = vmatpush.xpose.msra.mxu0 %v161
    %v163 = vand.u32 %v37, 4294901760
    %164 = vmatmul.f32.gmra.mxu0 %v163
    %v165 = vpop.f32.mrf.mxu0
    %v166 = vadd.f32 %v97, %v165
    %v167 = vand.u32 %v40, 4294901760
    %168 = vmatmul.f32.gmra.mxu0 %v167
    %v169 = vpop.f32.mrf.mxu0
    %v170 = vadd.f32 %v105, %v169
    %171 = vdwg.mxu0
    %172 = vmatpush.xpose.msra.mxu0 0.0
    %173 = vmatpush.xpose.msra.mxu0 0.0
    %174 = vmatpush.xpose.msra.mxu0 0.0
    %175 = vmatpush.xpose.msra.mxu0 0.0
    %176 = vmatpush.xpose.msra.mxu0 0.0
    %177 = vmatpush.xpose.msra.mxu0 0.0
    %178 = vmatpush.xpose.msra.mxu0 0.0
    %179 = vmatpush.xpose.msra.mxu0 0.0
    %v180 = vand.u32 %v64, 4294901760
    %v181 = vsub.f32 %v64, %v180
    %182 = vmatpush.xpose.msra.mxu0 %v181
    %v183 = vand.u32 %v61, 4294901760
    %v184 = vsub.f32 %v61, %v183
    %185 = vmatpush.xpose.msra.mxu0 %v184
    %v186 = vand.u32 %v58, 4294901760
    %v187 = vsub.f32 %v58, %v186
    %188 = vmatpush.xpose.msra.mxu0 %v187
    %v189 = vand.u32 %v55, 4294901760
    %v190 = vsub.f32 %v55, %v189
    %191 = vmatpush.xpose.msra.mxu0 %v190
    %v192 = vand.u32 %v52, 4294901760
    %v193 = vsub.f32 %v52, %v192
    %194 = vmatpush.xpose.msra.mxu0 %v193
    %v195 = vand.u32 %v49, 4294901760
    %v196 = vsub.f32 %v49, %v195
    %197 = vmatpush.xpose.msra.mxu0 %v196
    %v198 = vand.u32 %v46, 4294901760
    %v199 = vsub.f32 %v46, %v198
    %200 = vmatpush.xpose.msra.mxu0 %v199
    %v201 = vand.u32 %v43, 4294901760
    %v202 = vsub.f32 %v43, %v201
    %203 = vmatpush.xpose.msra.mxu0 %v202
    %v204 = vand.u32 %v37, 4294901760
    %v205 = vsub.f32 %v37, %v204
    %206 = vmatmul.f32.gmra.mxu0 %v205
    %v207 = vpop.f32.mrf.mxu0
    %v208 = vadd.f32 %v166, %v207
    %v209 = vand.u32 %v40, 4294901760
    %v210 = vsub.f32 %v40, %v209
    %211 = vmatmul.f32.gmra.mxu0 %v210
    %v212 = vpop.f32.mrf.mxu0
    %v213 = vadd.f32 %v170, %v212
    %214 = vdwg.mxu0
    %215 = vmatpush.xpose.msra.mxu0 0.0
    %216 = vmatpush.xpose.msra.mxu0 0.0
    %217 = vmatpush.xpose.msra.mxu0 0.0
    %218 = vmatpush.xpose.msra.mxu0 0.0
    %219 = vmatpush.xpose.msra.mxu0 0.0
    %220 = vmatpush.xpose.msra.mxu0 0.0
    %221 = vmatpush.xpose.msra.mxu0 0.0
    %222 = vmatpush.xpose.msra.mxu0 0.0
    %v223 = vand.u32 %v64, 4294901760
    %224 = vmatpush.xpose.msra.mxu0 %v223
    %v225 = vand.u32 %v61, 4294901760
    %226 = vmatpush.xpose.msra.mxu0 %v225
    %v227 = vand.u32 %v58, 4294901760
    %228 = vmatpush.xpose.msra.mxu0 %v227
    %v229 = vand.u32 %v55, 4294901760
    %230 = vmatpush.xpose.msra.mxu0 %v229
    %v231 = vand.u32 %v52, 4294901760
    %232 = vmatpush.xpose.msra.mxu0 %v231
    %v233 = vand.u32 %v49, 4294901760
    %234 = vmatpush.xpose.msra.mxu0 %v233
    %v235 = vand.u32 %v46, 4294901760
    %236 = vmatpush.xpose.msra.mxu0 %v235
    %v237 = vand.u32 %v43, 4294901760
    %238 = vmatpush.xpose.msra.mxu0 %v237
    %v239 = vand.u32 %v37, 4294901760
    %v240 = vsub.f32 %v37, %v239
    %v241 = vand.u32 %v240, 4294901760
    %242 = vmatmul.f32.gmra.mxu0 %v241
    %v243 = vpop.f32.mrf.mxu0
    %v244 = vadd.f32 %v208, %v243
    %v245 = vand.u32 %v40, 4294901760
    %v246 = vsub.f32 %v40, %v245
    %v247 = vand.u32 %v246, 4294901760
    %248 = vmatmul.f32.gmra.mxu0 %v247
    %v249 = vpop.f32.mrf.mxu0
    %v250 = vadd.f32 %v213, %v249
    %251 = vdwg.mxu0
    %252 = vmatpush.xpose.msra.mxu0 0.0
    %253 = vmatpush.xpose.msra.mxu0 0.0
    %254 = vmatpush.xpose.msra.mxu0 0.0
    %255 = vmatpush.xpose.msra.mxu0 0.0
    %256 = vmatpush.xpose.msra.mxu0 0.0
    %257 = vmatpush.xpose.msra.mxu0 0.0
    %258 = vmatpush.xpose.msra.mxu0 0.0
    %259 = vmatpush.xpose.msra.mxu0 0.0
    %v260 = vand.u32 %v64, 4294901760
    %v261 = vsub.f32 %v64, %v260
    %v262 = vand.u32 %v261, 4294901760
    %263 = vmatpush.xpose.msra.mxu0 %v262
    %v264 = vand.u32 %v61, 4294901760
    %v265 = vsub.f32 %v61, %v264
    %v266 = vand.u32 %v265, 4294901760
    %267 = vmatpush.xpose.msra.mxu0 %v266
    %v268 = vand.u32 %v58, 4294901760
    %v269 = vsub.f32 %v58, %v268
    %v270 = vand.u32 %v269, 4294901760
    %271 = vmatpush.xpose.msra.mxu0 %v270
    %v272 = vand.u32 %v55, 4294901760
    %v273 = vsub.f32 %v55, %v272
    %v274 = vand.u32 %v273, 4294901760
    %275 = vmatpush.xpose.msra.mxu0 %v274
    %v276 = vand.u32 %v52, 4294901760
    %v277 = vsub.f32 %v52, %v276
    %v278 = vand.u32 %v277, 4294901760
    %279 = vmatpush.xpose.msra.mxu0 %v278
    %v280 = vand.u32 %v49, 4294901760
    %v281 = vsub.f32 %v49, %v280
    %v282 = vand.u32 %v281, 4294901760
    %283 = vmatpush.xpose.msra.mxu0 %v282
    %v284 = vand.u32 %v46, 4294901760
    %v285 = vsub.f32 %v46, %v284
    %v286 = vand.u32 %v285, 4294901760
    %287 = vmatpush.xpose.msra.mxu0 %v286
    %v288 = vand.u32 %v43, 4294901760
    %v289 = vsub.f32 %v43, %v288
    %v290 = vand.u32 %v289, 4294901760
    %291 = vmatpush.xpose.msra.mxu0 %v290
    %v292 = vand.u32 %v37, 4294901760
    %293 = vmatmul.f32.gmra.mxu0 %v292
    %v294 = vpop.f32.mrf.mxu0
    %v295 = vadd.f32 %v244, %v294
    %v296 = vand.u32 %v40, 4294901760
    %297 = vmatmul.f32.gmra.mxu0 %v296
    %v298 = vpop.f32.mrf.mxu0
    %v299 = vadd.f32 %v250, %v298
    %300 = vdwg.mxu0
    %301 = vmatpush.xpose.msra.mxu0 0.0
    %302 = vmatpush.xpose.msra.mxu0 0.0
    %303 = vmatpush.xpose.msra.mxu0 0.0
    %304 = vmatpush.xpose.msra.mxu0 0.0
    %305 = vmatpush.xpose.msra.mxu0 0.0
    %306 = vmatpush.xpose.msra.mxu0 0.0
    %307 = vmatpush.xpose.msra.mxu0 0.0
    %308 = vmatpush.xpose.msra.mxu0 0.0
    %v309 = vand.u32 %v64, 4294901760
    %310 = vmatpush.xpose.msra.mxu0 %v309
    %v311 = vand.u32 %v61, 4294901760
    %312 = vmatpush.xpose.msra.mxu0 %v311
    %v313 = vand.u32 %v58, 4294901760
    %314 = vmatpush.xpose.msra.mxu0 %v313
    %v315 = vand.u32 %v55, 4294901760
    %316 = vmatpush.xpose.msra.mxu0 %v315
    %v317 = vand.u32 %v52, 4294901760
    %318 = vmatpush.xpose.msra.mxu0 %v317
    %v319 = vand.u32 %v49, 4294901760
    %320 = vmatpush.xpose.msra.mxu0 %v319
    %v321 = vand.u32 %v46, 4294901760
    %322 = vmatpush.xpose.msra.mxu0 %v321
    %v323 = vand.u32 %v43, 4294901760
    %324 = vmatpush.xpose.msra.mxu0 %v323
    %v325 = vand.u32 %v37, 4294901760
    %326 = vmatmul.f32.gmra.mxu0 %v325
    %v327 = vpop.f32.mrf.mxu0
    %v328 = vadd.f32 %v295, %v327
    %v329 = vand.u32 %v40, 4294901760
    %330 = vmatmul.f32.gmra.mxu0 %v329
    %v331 = vpop.f32.mrf.mxu0
    %v332 = vadd.f32 %v299, %v331
    %333 = vdwg.mxu0
    %v334 = vmax.f32 %v328, 0.0
    %v335 = vmax.f32 %v332, 0.0
    %v336 = vld [vmem:[%s3] sm:$0xff]
    %v337 = vld [vmem:[%s3 + $0x8] sm:$0xff]
    %v338 = vld [vmem:[%s3 + $0x10] sm:$0xff]
    %v339 = vld [vmem:[%s3 + $0x18] sm:$0xff]
    %v340 = vld [vmem:[%s4] sm:$0x1]
    %v342 = vperm.slane %v340, 0
    %vm344 = vcmask 523264
    %v346 = vsel %vm344, %v334, 0
    %v349 = vsel %vm344, %v335, 0
    %v352 = vsel %vm344, %v336, 0
    %v355 = vsel %vm344, %v337, 0
    %v358 = vsel %vm344, %v338, 0
    %v361 = vsel %vm344, %v339, 0
    %363 = vmatpush.xpose.msra.mxu0 0.0
    %364 = vmatpush.xpose.msra.mxu0 0.0
    %365 = vmatpush.xpose.msra.mxu0 0.0
    %366 = vmatpush.xpose.msra.mxu0 0.0
    %367 = vmatpush.xpose.msra.mxu0 0.0
    %368 = vmatpush.xpose.msra.mxu0 0.0
    %369 = vmatpush.xpose.msra.mxu0 0.0
    %370 = vmatpush.xpose.msra.mxu0 0.0
    %371 = vmatpush.xpose.msra.mxu0 0.0
    %372 = vmatpush.xpose.msra.mxu0 0.0
    %373 = vmatpush.xpose.msra.mxu0 0.0
    %374 = vmatpush.xpose.msra.mxu0 0.0
    %v375 = vand.u32 %v361, 4294901760
    %376 = vmatpush.xpose.msra.mxu0 %v375
    %v377 = vand.u32 %v358, 4294901760
    %378 = vmatpush.xpose.msra.mxu0 %v377
    %v379 = vand.u32 %v355, 4294901760
    %380 = vmatpush.xpose.msra.mxu0 %v379
    %v381 = vand.u32 %v352, 4294901760
    %382 = vmatpush.xpose.msra.mxu0 %v381
    %v383 = vand.u32 %v346, 4294901760
    %v384 = vsub.f32 %v346, %v383
    %v385 = vand.u32 %v384, 4294901760
    %v386 = vsub.f32 %v384, %v385
    %v387 = vand.u32 %v386, 4294901760
    %388 = vmatmul.f32.gmra.mxu0 %v387
    %v389 = vpop.f32.mrf.mxu0
    %v390 = vadd.f32 %v342, %v389
    %v391 = vand.u32 %v349, 4294901760
    %v392 = vsub.f32 %v349, %v391
    %v393 = vand.u32 %v392, 4294901760
    %v394 = vsub.f32 %v392, %v393
    %v395 = vand.u32 %v394, 4294901760
    %396 = vmatmul.f32.gmra.mxu0 %v395
    %v397 = vpop.f32.mrf.mxu0
    %v398 = vadd.f32 %v342, %v397
    %399 = vdwg.mxu0
    %400 = vmatpush.xpose.msra.mxu0 0.0
    %401 = vmatpush.xpose.msra.mxu0 0.0
    %402 = vmatpush.xpose.msra.mxu0 0.0
    %403 = vmatpush.xpose.msra.mxu0 0.0
    %404 = vmatpush.xpose.msra.mxu0 0.0
    %405 = vmatpush.xpose.msra.mxu0 0.0
    %406 = vmatpush.xpose.msra.mxu0 0.0
    %407 = vmatpush.xpose.msra.mxu0 0.0
    %408 = vmatpush.xpose.msra.mxu0 0.0
    %409 = vmatpush.xpose.msra.mxu0 0.0
    %410 = vmatpush.xpose.msra.mxu0 0.0
    %411 = vmatpush.xpose.msra.mxu0 0.0
    %v412 = vand.u32 %v361, 4294901760
    %v413 = vsub.f32 %v361, %v412
    %v414 = vand.u32 %v413, 4294901760
    %v415 = vsub.f32 %v413, %v414
    %v416 = vand.u32 %v415, 4294901760
    %417 = vmatpush.xpose.msra.mxu0 %v416
    %v418 = vand.u32 %v358, 4294901760
    %v419 = vsub.f32 %v358, %v418
    %v420 = vand.u32 %v419, 4294901760
    %v421 = vsub.f32 %v419, %v420
    %v422 = vand.u32 %v421, 4294901760
    %423 = vmatpush.xpose.msra.mxu0 %v422
    %v424 = vand.u32 %v355, 4294901760
    %v425 = vsub.f32 %v355, %v424
    %v426 = vand.u32 %v425, 4294901760
    %v427 = vsub.f32 %v425, %v426
    %v428 = vand.u32 %v427, 4294901760
    %429 = vmatpush.xpose.msra.mxu0 %v428
    %v430 = vand.u32 %v352, 4294901760
    %v431 = vsub.f32 %v352, %v430
    %v432 = vand.u32 %v431, 4294901760
    %v433 = vsub.f32 %v431, %v432
    %v434 = vand.u32 %v433, 4294901760
    %435 = vmatpush.xpose.msra.mxu0 %v434
    %v436 = vand.u32 %v346, 4294901760
    %437 = vmatmul.f32.gmra.mxu0 %v436
    %v438 = vpop.f32.mrf.mxu0
    %v439 = vadd.f32 %v390, %v438
    %v440 = vand.u32 %v349, 4294901760
    %441 = vmatmul.f32.gmra.mxu0 %v440
    %v442 = vpop.f32.mrf.mxu0
    %v443 = vadd.f32 %v398, %v442
    %444 = vdwg.mxu0
    %445 = vmatpush.xpose.msra.mxu0 0.0
    %446 = vmatpush.xpose.msra.mxu0 0.0
    %447 = vmatpush.xpose.msra.mxu0 0.0
    %448 = vmatpush.xpose.msra.mxu0 0.0
    %449 = vmatpush.xpose.msra.mxu0 0.0
    %450 = vmatpush.xpose.msra.mxu0 0.0
    %451 = vmatpush.xpose.msra.mxu0 0.0
    %452 = vmatpush.xpose.msra.mxu0 0.0
    %453 = vmatpush.xpose.msra.mxu0 0.0
    %454 = vmatpush.xpose.msra.mxu0 0.0
    %455 = vmatpush.xpose.msra.mxu0 0.0
    %456 = vmatpush.xpose.msra.mxu0 0.0
    %v457 = vand.u32 %v361, 4294901760
    %v458 = vsub.f32 %v361, %v457
    %459 = vmatpush.xpose.msra.mxu0 %v458
    %v460 = vand.u32 %v358, 4294901760
    %v461 = vsub.f32 %v358, %v460
    %462 = vmatpush.xpose.msra.mxu0 %v461
    %v463 = vand.u32 %v355, 4294901760
    %v464 = vsub.f32 %v355, %v463
    %465 = vmatpush.xpose.msra.mxu0 %v464
    %v466 = vand.u32 %v352, 4294901760
    %v467 = vsub.f32 %v352, %v466
    %468 = vmatpush.xpose.msra.mxu0 %v467
    %v469 = vand.u32 %v346, 4294901760
    %v470 = vsub.f32 %v346, %v469
    %471 = vmatmul.f32.gmra.mxu0 %v470
    %v472 = vpop.f32.mrf.mxu0
    %v473 = vadd.f32 %v439, %v472
    %v474 = vand.u32 %v349, 4294901760
    %v475 = vsub.f32 %v349, %v474
    %476 = vmatmul.f32.gmra.mxu0 %v475
    %v477 = vpop.f32.mrf.mxu0
    %v478 = vadd.f32 %v443, %v477
    %479 = vdwg.mxu0
    %480 = vmatpush.xpose.msra.mxu0 0.0
    %481 = vmatpush.xpose.msra.mxu0 0.0
    %482 = vmatpush.xpose.msra.mxu0 0.0
    %483 = vmatpush.xpose.msra.mxu0 0.0
    %484 = vmatpush.xpose.msra.mxu0 0.0
    %485 = vmatpush.xpose.msra.mxu0 0.0
    %486 = vmatpush.xpose.msra.mxu0 0.0
    %487 = vmatpush.xpose.msra.mxu0 0.0
    %488 = vmatpush.xpose.msra.mxu0 0.0
    %489 = vmatpush.xpose.msra.mxu0 0.0
    %490 = vmatpush.xpose.msra.mxu0 0.0
    %491 = vmatpush.xpose.msra.mxu0 0.0
    %v492 = vand.u32 %v361, 4294901760
    %493 = vmatpush.xpose.msra.mxu0 %v492
    %v494 = vand.u32 %v358, 4294901760
    %495 = vmatpush.xpose.msra.mxu0 %v494
    %v496 = vand.u32 %v355, 4294901760
    %497 = vmatpush.xpose.msra.mxu0 %v496
    %v498 = vand.u32 %v352, 4294901760
    %499 = vmatpush.xpose.msra.mxu0 %v498
    %v500 = vand.u32 %v346, 4294901760
    %v501 = vsub.f32 %v346, %v500
    %v502 = vand.u32 %v501, 4294901760
    %503 = vmatmul.f32.gmra.mxu0 %v502
    %v504 = vpop.f32.mrf.mxu0
    %v505 = vadd.f32 %v473, %v504
    %v506 = vand.u32 %v349, 4294901760
    %v507 = vsub.f32 %v349, %v506
    %v508 = vand.u32 %v507, 4294901760
    %509 = vmatmul.f32.gmra.mxu0 %v508
    %v510 = vpop.f32.mrf.mxu0
    %v511 = vadd.f32 %v478, %v510
    %512 = vdwg.mxu0
    %513 = vmatpush.xpose.msra.mxu0 0.0
    %514 = vmatpush.xpose.msra.mxu0 0.0
    %515 = vmatpush.xpose.msra.mxu0 0.0
    %516 = vmatpush.xpose.msra.mxu0 0.0
    %517 = vmatpush.xpose.msra.mxu0 0.0
    %518 = vmatpush.xpose.msra.mxu0 0.0
    %519 = vmatpush.xpose.msra.mxu0 0.0
    %520 = vmatpush.xpose.msra.mxu0 0.0
    %521 = vmatpush.xpose.msra.mxu0 0.0
    %522 = vmatpush.xpose.msra.mxu0 0.0
    %523 = vmatpush.xpose.msra.mxu0 0.0
    %524 = vmatpush.xpose.msra.mxu0 0.0
    %v525 = vand.u32 %v361, 4294901760
    %v526 = vsub.f32 %v361, %v525
    %v527 = vand.u32 %v526, 4294901760
    %528 = vmatpush.xpose.msra.mxu0 %v527
    %v529 = vand.u32 %v358, 4294901760
    %v530 = vsub.f32 %v358, %v529
    %v531 = vand.u32 %v530, 4294901760
    %532 = vmatpush.xpose.msra.mxu0 %v531
    %v533 = vand.u32 %v355, 4294901760
    %v534 = vsub.f32 %v355, %v533
    %v535 = vand.u32 %v534, 4294901760
    %536 = vmatpush.xpose.msra.mxu0 %v535
    %v537 = vand.u32 %v352, 4294901760
    %v538 = vsub.f32 %v352, %v537
    %v539 = vand.u32 %v538, 4294901760
    %540 = vmatpush.xpose.msra.mxu0 %v539
    %v541 = vand.u32 %v346, 4294901760
    %542 = vmatmul.f32.gmra.mxu0 %v541
    %v543 = vpop.f32.mrf.mxu0
    %v544 = vadd.f32 %v505, %v543
    %v545 = vand.u32 %v349, 4294901760
    %546 = vmatmul.f32.gmra.mxu0 %v545
    %v547 = vpop.f32.mrf.mxu0
    %v548 = vadd.f32 %v511, %v547
    %549 = vdwg.mxu0
    %550 = vmatpush.xpose.msra.mxu0 0.0
    %551 = vmatpush.xpose.msra.mxu0 0.0
    %552 = vmatpush.xpose.msra.mxu0 0.0
    %553 = vmatpush.xpose.msra.mxu0 0.0
    %554 = vmatpush.xpose.msra.mxu0 0.0
    %555 = vmatpush.xpose.msra.mxu0 0.0
    %556 = vmatpush.xpose.msra.mxu0 0.0
    %557 = vmatpush.xpose.msra.mxu0 0.0
    %558 = vmatpush.xpose.msra.mxu0 0.0
    %559 = vmatpush.xpose.msra.mxu0 0.0
    %560 = vmatpush.xpose.msra.mxu0 0.0
    %561 = vmatpush.xpose.msra.mxu0 0.0
    %v562 = vand.u32 %v361, 4294901760
    %563 = vmatpush.xpose.msra.mxu0 %v562
    %v564 = vand.u32 %v358, 4294901760
    %565 = vmatpush.xpose.msra.mxu0 %v564
    %v566 = vand.u32 %v355, 4294901760
    %567 = vmatpush.xpose.msra.mxu0 %v566
    %v568 = vand.u32 %v352, 4294901760
    %569 = vmatpush.xpose.msra.mxu0 %v568
    %v570 = vand.u32 %v346, 4294901760
    %571 = vmatmul.f32.gmra.mxu0 %v570
    %v572 = vpop.f32.mrf.mxu0
    %v573 = vadd.f32 %v544, %v572
    %v574 = vand.u32 %v349, 4294901760
    %575 = vmatmul.f32.gmra.mxu0 %v574
    %v576 = vpop.f32.mrf.mxu0
    %v577 = vadd.f32 %v548, %v576
    %578 = vdwg.mxu0
    %579 = vst.msk [vmem:[#allocation2] sm:$0xff] %vm35, %v573
    %580 = vst.msk [vmem:[#allocation2 + $0x8] sm:$0xff] %vm35, %v577
    // Predicated region
    $region22: #{positionwise_ffn.1} parent=1 // pred_check
      _
    $region23: #{positionwise_ffn.1} parent=1 // pred_check_branch
      %582 = sbr.rel (0) target = $region25
    $region24: #{positionwise_ffn.1} parent=1 // pred_region
      %584 = vsyncadd [#allocation3], 0
      %s585 = sshll.u32 [#allocation2], 4
      %s586 = int_to_ptr.vmem [resolvable:$true] %s585
      %s587 = sshll.u32 %s5, 4
      %s588 = int_to_ptr.hbm [resolvable:$true] %s587
      %593 = dma.vmem_to_hbm [thread:$0]  %s586, 256, %s588, [#allocation3], 128, 128, 8
    $region25: #{positionwise_ffn.1} parent=1 // pred_fallthru
      _
    // Predicated region
    $region26: #{positionwise_ffn.1} parent=1 // pred_check
      _
    $region27: #{positionwise_ffn.1} parent=1 // pred_check_branch
      %595 = sbr.rel (0) target = $region29
    $region28: #{positionwise_ffn.1} parent=1 // pred_region
      %597 = dma.done [#allocation3], 256
    $region29: #{positionwise_ffn.1} parent=1 // pred_fallthru
      _
    %598 = vsyncpa [#allocation3], 1

</llo_original>
